<compile_context>
chip_gen: v6e
topology: v6e:2x2x1
jax: 0.10.0
libtpu: 0.0.40
codegen_flags: <defaults>
</compile_context>

<pallas_src>
import functools

import jax
import jax.numpy as jnp
from jax.experimental import pallas as pl
from jax.experimental.pallas import tpu as pltpu

IN_FEATURES = 10
HIDDEN = 5
OUT_FEATURES = 1


def _mlp_kernel(x_ref, w1_ref, b1_ref, w2_ref, b2_ref, o_ref):
    # x_ref:  (10, TB)   -- batch on lanes (lane-dense)
    # w1_ref: (5, 10)    b1_ref: (5, 1)
    # w2_ref: (1, 5)     b2_ref: (1, 1)
    # o_ref:  (1, TB)    -- lane-dense output
    x = x_ref[...]
    w1 = w1_ref[...]
    w2 = w2_ref[...]
    tb = x.shape[1]

    # Layer 1: h = relu(w1 @ x + b1) as 10 unrolled VPU broadcast MACs.
    h = jnp.broadcast_to(b1_ref[...], (HIDDEN, tb))
    for k in range(IN_FEATURES):
        h = h + w1[:, k:k + 1] * x[k:k + 1, :]
    h = jnp.maximum(h, 0.0)

    # Layer 2: z = w2 @ h + b2 as 5 unrolled VPU broadcast MACs (no MXU).
    z = jnp.broadcast_to(b2_ref[...], (OUT_FEATURES, tb))
    for j in range(HIDDEN):
        z = z + w2[:, j:j + 1] * h[j:j + 1, :]

    o_ref[...] = jax.nn.sigmoid(z).astype(o_ref.dtype)


def _round_up(n, m):
    return ((n + m - 1) // m) * m


@functools.partial(jax.jit, static_argnames=("tile_b",))
def simple_model_forward(x, w1, b1, w2, b2, *, tile_b=None):
    """Fused forward pass of SimpleModel.

    x:  (B, 10) float32
    w1: (5, 10) float32 (PyTorch nn.Linear layout)
    b1: (5,)    float32
    w2: (1, 5)  float32
    b2: (1,)    float32
    returns (B, 1) float32
    """
    B = x.shape[0]
    if tile_b is None:
        # Lane-dense layout -> tiny footprint; 4096-row tiles double-buffer
        # well within the default scoped VMEM on v5e/v6e/v7x.
        tile_b = min(4096, _round_up(B, 128))
    grid_b = pl.cdiv(B, tile_b)
    Bp = grid_b * tile_b

    x32 = jnp.asarray(x, jnp.float32)
    # Layout plumbing only: batch -> lanes, pad batch to a tile multiple.
    xt = jnp.pad(x32.T, ((0, 0), (0, Bp - B)))              # (10, Bp)

    w1f = jnp.asarray(w1, jnp.float32)                      # (5, 10)
    b1f = jnp.asarray(b1, jnp.float32).reshape(HIDDEN, 1)   # (5, 1)
    w2f = jnp.asarray(w2, jnp.float32)                      # (1, 5)
    b2f = jnp.asarray(b2, jnp.float32).reshape(1, 1)        # (1, 1)

    out = pl.pallas_call(
        _mlp_kernel,
        out_shape=jax.ShapeDtypeStruct((OUT_FEATURES, Bp), jnp.float32),
        grid=(grid_b,),
        in_specs=[
            # x: tiled along the (lane) batch axis -> pipelined DMAs.
            pl.BlockSpec((IN_FEATURES, tile_b), lambda i: (0, i)),
            # Weights/biases: constant block index -> fetched once, stay
            # resident in VMEM across all grid steps.
            pl.BlockSpec((HIDDEN, IN_FEATURES), lambda i: (0, 0)),
            pl.BlockSpec((HIDDEN, 1), lambda i: (0, 0)),
            pl.BlockSpec((OUT_FEATURES, HIDDEN), lambda i: (0, 0)),
            pl.BlockSpec((OUT_FEATURES, 1), lambda i: (0, 0)),
        ],
        out_specs=pl.BlockSpec((OUT_FEATURES, tile_b), lambda i: (0, i)),
        compiler_params=pltpu.CompilerParams(
            dimension_semantics=("parallel",)),
    )(xt, w1f, b1f, w2f, b2f)

    return out[:, :B].T                                      # (B, 1)


def _reference(x, w1, b1, w2, b2):
    h = jnp.maximum(x @ w1.T + b1, 0.0)
    return jax.nn.sigmoid(h @ w2.T + b2)


if __name__ == "__main__":
    key = jax.random.PRNGKey(0)
    kx, k1, k2, k3, k4, kx2 = jax.random.split(key, 6)

    B = 8
    x = jax.random.normal(kx, (B, IN_FEATURES), dtype=jnp.float32)

    # Deterministic parameter init (uniform, roughly PyTorch's default scale).
    w1 = jax.random.uniform(k1, (HIDDEN, IN_FEATURES), jnp.float32, -0.3, 0.3)
    b1 = jax.random.uniform(k2, (HIDDEN,), jnp.float32, -0.3, 0.3)
    w2 = jax.random.uniform(k3, (OUT_FEATURES, HIDDEN), jnp.float32, -0.4, 0.4)
    b2 = jax.random.uniform(k4, (OUT_FEATURES,), jnp.float32, -0.4, 0.4)

    out = jax.block_until_ready(simple_model_forward(x, w1, b1, w2, b2))
    ref = _reference(x, w1, b1, w2, b2)
    assert out.shape == (B, 1)
    assert jnp.allclose(out, ref, atol=1e-5, rtol=1e-5)

    # Exercise the multi-tile pipelined path with a ragged (non-multiple) batch.
    B2 = 300
    x2 = jax.random.normal(kx2, (B2, IN_FEATURES), dtype=jnp.float32)
    out2 = jax.block_until_ready(
        simple_model_forward(x2, w1, b1, w2, b2, tile_b=128))
    ref2 = _reference(x2, w1, b1, w2, b2)
    assert out2.shape == (B2, 1)
    assert jnp.allclose(out2, ref2, atol=1e-5, rtol=1e-5)

    print("KERNEL_OK")
</pallas_src>

<mosaic_0001>
module attributes {stable_mosaic.version = 11 : i64} {
  func.func @_mlp_kernel(%arg0: i32, %arg1: memref<10x128xf32, #tpu.memory_space<vmem>>, %arg2: memref<5x10xf32, #tpu.memory_space<vmem>>, %arg3: memref<5x1xf32, #tpu.memory_space<vmem>>, %arg4: memref<1x5xf32, #tpu.memory_space<vmem>>, %arg5: memref<1x1xf32, #tpu.memory_space<vmem>>, %arg6: memref<1x128xf32, #tpu.memory_space<vmem>>) attributes {dimension_semantics = [#tpu.dimension_semantics<parallel>], iteration_bounds = array<i64: 1>, scalar_prefetch = 0 : i64, scratch_operands = 0 : i64, tpu.core_type = #tpu.core_type<tc>, window_params = [{transform_indices = @transform_0, window_bounds = array<i64: 10, 128>}, {pipeline_mode = #tpu.pipeline_mode<synchronous>, transform_indices = @transform_1, window_bounds = array<i64: 5, 10>}, {pipeline_mode = #tpu.pipeline_mode<synchronous>, transform_indices = @transform_2, window_bounds = array<i64: 5, 1>}, {pipeline_mode = #tpu.pipeline_mode<synchronous>, transform_indices = @transform_3, window_bounds = array<i64: 1, 5>}, {pipeline_mode = #tpu.pipeline_mode<synchronous>, transform_indices = @transform_4, window_bounds = array<i64: 1, 1>}, {transform_indices = @transform_5, window_bounds = array<i64: 1, 128>}]} {
    %c0 = arith.constant 0 : index
    %c0_0 = arith.constant 0 : index
    %0 = vector.load %arg1[%c0, %c0_0] : memref<10x128xf32, #tpu.memory_space<vmem>>, vector<10x128xf32>
    %c0_1 = arith.constant 0 : index
    %c0_2 = arith.constant 0 : index
    %1 = vector.load %arg2[%c0_1, %c0_2] : memref<5x10xf32, #tpu.memory_space<vmem>>, vector<5x10xf32>
    %c0_3 = arith.constant 0 : index
    %c0_4 = arith.constant 0 : index
    %2 = vector.load %arg4[%c0_3, %c0_4] : memref<1x5xf32, #tpu.memory_space<vmem>>, vector<1x5xf32>
    %c0_5 = arith.constant 0 : index
    %c0_6 = arith.constant 0 : index
    %3 = vector.load %arg3[%c0_5, %c0_6] : memref<5x1xf32, #tpu.memory_space<vmem>>, vector<5x1xf32>
    %4 = vector.shape_cast %3 : vector<5x1xf32> to vector<5x1xf32>
    %5 = vector.broadcast %4 : vector<5x1xf32> to vector<5x128xf32>
    %6 = vector.extract_strided_slice %1 {offsets = [0, 0], sizes = [5, 1], strides = [1, 1]} : vector<5x10xf32> to vector<5x1xf32>
    %7 = vector.extract_strided_slice %0 {offsets = [0, 0], sizes = [1, 128], strides = [1, 1]} : vector<10x128xf32> to vector<1x128xf32>
    %8 = vector.broadcast %6 : vector<5x1xf32> to vector<5x128xf32>
    %9 = vector.broadcast %7 : vector<1x128xf32> to vector<5x128xf32>
    %10 = arith.mulf %8, %9 : vector<5x128xf32>
    %11 = arith.addf %5, %10 : vector<5x128xf32>
    %12 = vector.extract_strided_slice %1 {offsets = [0, 1], sizes = [5, 1], strides = [1, 1]} : vector<5x10xf32> to vector<5x1xf32>
    %13 = vector.extract_strided_slice %0 {offsets = [1, 0], sizes = [1, 128], strides = [1, 1]} : vector<10x128xf32> to vector<1x128xf32>
    %14 = vector.broadcast %12 : vector<5x1xf32> to vector<5x128xf32>
    %15 = vector.broadcast %13 : vector<1x128xf32> to vector<5x128xf32>
    %16 = arith.mulf %14, %15 : vector<5x128xf32>
    %17 = arith.addf %11, %16 : vector<5x128xf32>
    %18 = vector.extract_strided_slice %1 {offsets = [0, 2], sizes = [5, 1], strides = [1, 1]} : vector<5x10xf32> to vector<5x1xf32>
    %19 = vector.extract_strided_slice %0 {offsets = [2, 0], sizes = [1, 128], strides = [1, 1]} : vector<10x128xf32> to vector<1x128xf32>
    %20 = vector.broadcast %18 : vector<5x1xf32> to vector<5x128xf32>
    %21 = vector.broadcast %19 : vector<1x128xf32> to vector<5x128xf32>
    %22 = arith.mulf %20, %21 : vector<5x128xf32>
    %23 = arith.addf %17, %22 : vector<5x128xf32>
    %24 = vector.extract_strided_slice %1 {offsets = [0, 3], sizes = [5, 1], strides = [1, 1]} : vector<5x10xf32> to vector<5x1xf32>
    %25 = vector.extract_strided_slice %0 {offsets = [3, 0], sizes = [1, 128], strides = [1, 1]} : vector<10x128xf32> to vector<1x128xf32>
    %26 = vector.broadcast %24 : vector<5x1xf32> to vector<5x128xf32>
    %27 = vector.broadcast %25 : vector<1x128xf32> to vector<5x128xf32>
    %28 = arith.mulf %26, %27 : vector<5x128xf32>
    %29 = arith.addf %23, %28 : vector<5x128xf32>
    %30 = vector.extract_strided_slice %1 {offsets = [0, 4], sizes = [5, 1], strides = [1, 1]} : vector<5x10xf32> to vector<5x1xf32>
    %31 = vector.extract_strided_slice %0 {offsets = [4, 0], sizes = [1, 128], strides = [1, 1]} : vector<10x128xf32> to vector<1x128xf32>
    %32 = vector.broadcast %30 : vector<5x1xf32> to vector<5x128xf32>
    %33 = vector.broadcast %31 : vector<1x128xf32> to vector<5x128xf32>
    %34 = arith.mulf %32, %33 : vector<5x128xf32>
    %35 = arith.addf %29, %34 : vector<5x128xf32>
    %36 = vector.extract_strided_slice %1 {offsets = [0, 5], sizes = [5, 1], strides = [1, 1]} : vector<5x10xf32> to vector<5x1xf32>
    %37 = vector.extract_strided_slice %0 {offsets = [5, 0], sizes = [1, 128], strides = [1, 1]} : vector<10x128xf32> to vector<1x128xf32>
    %38 = vector.broadcast %36 : vector<5x1xf32> to vector<5x128xf32>
    %39 = vector.broadcast %37 : vector<1x128xf32> to vector<5x128xf32>
    %40 = arith.mulf %38, %39 : vector<5x128xf32>
    %41 = arith.addf %35, %40 : vector<5x128xf32>
    %42 = vector.extract_strided_slice %1 {offsets = [0, 6], sizes = [5, 1], strides = [1, 1]} : vector<5x10xf32> to vector<5x1xf32>
    %43 = vector.extract_strided_slice %0 {offsets = [6, 0], sizes = [1, 128], strides = [1, 1]} : vector<10x128xf32> to vector<1x128xf32>
    %44 = vector.broadcast %42 : vector<5x1xf32> to vector<5x128xf32>
    %45 = vector.broadcast %43 : vector<1x128xf32> to vector<5x128xf32>
    %46 = arith.mulf %44, %45 : vector<5x128xf32>
    %47 = arith.addf %41, %46 : vector<5x128xf32>
    %48 = vector.extract_strided_slice %1 {offsets = [0, 7], sizes = [5, 1], strides = [1, 1]} : vector<5x10xf32> to vector<5x1xf32>
    %49 = vector.extract_strided_slice %0 {offsets = [7, 0], sizes = [1, 128], strides = [1, 1]} : vector<10x128xf32> to vector<1x128xf32>
    %50 = vector.broadcast %48 : vector<5x1xf32> to vector<5x128xf32>
    %51 = vector.broadcast %49 : vector<1x128xf32> to vector<5x128xf32>
    %52 = arith.mulf %50, %51 : vector<5x128xf32>
    %53 = arith.addf %47, %52 : vector<5x128xf32>
    %54 = vector.extract_strided_slice %1 {offsets = [0, 8], sizes = [5, 1], strides = [1, 1]} : vector<5x10xf32> to vector<5x1xf32>
    %55 = vector.extract_strided_slice %0 {offsets = [8, 0], sizes = [1, 128], strides = [1, 1]} : vector<10x128xf32> to vector<1x128xf32>
    %56 = vector.broadcast %54 : vector<5x1xf32> to vector<5x128xf32>
    %57 = vector.broadcast %55 : vector<1x128xf32> to vector<5x128xf32>
    %58 = arith.mulf %56, %57 : vector<5x128xf32>
    %59 = arith.addf %53, %58 : vector<5x128xf32>
    %60 = vector.extract_strided_slice %1 {offsets = [0, 9], sizes = [5, 1], strides = [1, 1]} : vector<5x10xf32> to vector<5x1xf32>
    %61 = vector.extract_strided_slice %0 {offsets = [9, 0], sizes = [1, 128], strides = [1, 1]} : vector<10x128xf32> to vector<1x128xf32>
    %62 = vector.broadcast %60 : vector<5x1xf32> to vector<5x128xf32>
    %63 = vector.broadcast %61 : vector<1x128xf32> to vector<5x128xf32>
    %64 = arith.mulf %62, %63 : vector<5x128xf32>
    %65 = arith.addf %59, %64 : vector<5x128xf32>
    %cst = arith.constant 0.000000e+00 : f32
    %66 = vector.broadcast %cst : f32 to vector<5x128xf32>
    %67 = arith.maximumf %65, %66 : vector<5x128xf32>
    %c0_7 = arith.constant 0 : index
    %c0_8 = arith.constant 0 : index
    %68 = vector.load %arg5[%c0_7, %c0_8] : memref<1x1xf32, #tpu.memory_space<vmem>>, vector<1x1xf32>
    %69 = vector.shape_cast %68 : vector<1x1xf32> to vector<1x1xf32>
    %70 = vector.broadcast %69 : vector<1x1xf32> to vector<1x128xf32>
    %71 = vector.extract_strided_slice %2 {offsets = [0, 0], sizes = [1, 1], strides = [1, 1]} : vector<1x5xf32> to vector<1x1xf32>
    %72 = vector.extract_strided_slice %67 {offsets = [0, 0], sizes = [1, 128], strides = [1, 1]} : vector<5x128xf32> to vector<1x128xf32>
    %73 = vector.broadcast %71 : vector<1x1xf32> to vector<1x128xf32>
    %74 = arith.mulf %73, %72 : vector<1x128xf32>
    %75 = arith.addf %70, %74 : vector<1x128xf32>
    %76 = vector.extract_strided_slice %2 {offsets = [0, 1], sizes = [1, 1], strides = [1, 1]} : vector<1x5xf32> to vector<1x1xf32>
    %77 = vector.extract_strided_slice %67 {offsets = [1, 0], sizes = [1, 128], strides = [1, 1]} : vector<5x128xf32> to vector<1x128xf32>
    %78 = vector.broadcast %76 : vector<1x1xf32> to vector<1x128xf32>
    %79 = arith.mulf %78, %77 : vector<1x128xf32>
    %80 = arith.addf %75, %79 : vector<1x128xf32>
    %81 = vector.extract_strided_slice %2 {offsets = [0, 2], sizes = [1, 1], strides = [1, 1]} : vector<1x5xf32> to vector<1x1xf32>
    %82 = vector.extract_strided_slice %67 {offsets = [2, 0], sizes = [1, 128], strides = [1, 1]} : vector<5x128xf32> to vector<1x128xf32>
    %83 = vector.broadcast %81 : vector<1x1xf32> to vector<1x128xf32>
    %84 = arith.mulf %83, %82 : vector<1x128xf32>
    %85 = arith.addf %80, %84 : vector<1x128xf32>
    %86 = vector.extract_strided_slice %2 {offsets = [0, 3], sizes = [1, 1], strides = [1, 1]} : vector<1x5xf32> to vector<1x1xf32>
    %87 = vector.extract_strided_slice %67 {offsets = [3, 0], sizes = [1, 128], strides = [1, 1]} : vector<5x128xf32> to vector<1x128xf32>
    %88 = vector.broadcast %86 : vector<1x1xf32> to vector<1x128xf32>
    %89 = arith.mulf %88, %87 : vector<1x128xf32>
    %90 = arith.addf %85, %89 : vector<1x128xf32>
    %91 = vector.extract_strided_slice %2 {offsets = [0, 4], sizes = [1, 1], strides = [1, 1]} : vector<1x5xf32> to vector<1x1xf32>
    %92 = vector.extract_strided_slice %67 {offsets = [4, 0], sizes = [1, 128], strides = [1, 1]} : vector<5x128xf32> to vector<1x128xf32>
    %93 = vector.broadcast %91 : vector<1x1xf32> to vector<1x128xf32>
    %94 = arith.mulf %93, %92 : vector<1x128xf32>
    %95 = arith.addf %90, %94 : vector<1x128xf32>
    %96 = arith.negf %95 : vector<1x128xf32>
    %97 = math.exp %96 : vector<1x128xf32>
    %cst_9 = arith.constant 1.000000e+00 : f32
    %98 = vector.broadcast %cst_9 : f32 to vector<1x128xf32>
    %99 = arith.addf %98, %97 : vector<1x128xf32>
    %100 = arith.divf %98, %99 : vector<1x128xf32>
    %c0_10 = arith.constant 0 : index
    %c0_11 = arith.constant 0 : index
    %101 = vector.load %arg6[%c0_10, %c0_11] : memref<1x128xf32, #tpu.memory_space<vmem>>, vector<1x128xf32>
    tpu.vector_store %arg6[%c0_10, %c0_11], %100 {strides = array<i32>} : memref<1x128xf32, #tpu.memory_space<vmem>>, vector<1x128xf32>,
    return
  }
  func.func @transform_0(%arg0: i32) -> (i32, i32) {
    %c0_i32 = arith.constant 0 : i32
    %c0_i32_0 = arith.constant 0 : i32
    return %c0_i32, %arg0 : i32, i32
  }
  func.func @transform_1(%arg0: i32) -> (i32, i32) {
    %c0_i32 = arith.constant 0 : i32
    %c0_i32_0 = arith.constant 0 : i32
    %c0_i32_1 = arith.constant 0 : i32
    return %c0_i32, %c0_i32_0 : i32, i32
  }
  func.func @transform_2(%arg0: i32) -> (i32, i32) {
    %c0_i32 = arith.constant 0 : i32
    %c0_i32_0 = arith.constant 0 : i32
    %c0_i32_1 = arith.constant 0 : i32
    return %c0_i32, %c0_i32_0 : i32, i32
  }
  func.func @transform_3(%arg0: i32) -> (i32, i32) {
    %c0_i32 = arith.constant 0 : i32
    %c0_i32_0 = arith.constant 0 : i32
    %c0_i32_1 = arith.constant 0 : i32
    return %c0_i32, %c0_i32_0 : i32, i32
  }
  func.func @transform_4(%arg0: i32) -> (i32, i32) {
    %c0_i32 = arith.constant 0 : i32
    %c0_i32_0 = arith.constant 0 : i32
    %c0_i32_1 = arith.constant 0 : i32
    return %c0_i32, %c0_i32_0 : i32, i32
  }
  func.func @transform_5(%arg0: i32) -> (i32, i32) {
    %c0_i32 = arith.constant 0 : i32
    %c0_i32_0 = arith.constant 0 : i32
    return %c0_i32, %arg0 : i32, i32
  }
}

</mosaic_0001>

<llo_original>
// kernel: simple_model_forward.1
$region0: #{simple_model_forward.1}
  #allocation0 [shape = 'u32[]', space=smem, size = 0x4, offset = 0x4, fixed_abs, tag = 'smem constant byte address 0x4 - core index']
  #allocation1 [shape = 'u32[144,128]{1,0:T(1,128)}', space=vmem, size = 0x12000, scoped, tag = 'internal scratch']
  #allocation2 [shape = 'f32[1,1]{1,0:T(1,128)S(1)}', space=vmem, size = 0x200, scoped, tag = 'scoped memory for simple_model_forward.1']
  %s0 = inlined_call_operand.vmem [shape: f32[10,128], index: 0, kind: input, shape index: {}]
  %s1 = inlined_call_operand.vmem [shape: f32[5,10], index: 1, kind: input, shape index: {}]
  %s2 = inlined_call_operand.vmem [shape: f32[5,1], index: 2, kind: input, shape index: {}]
  %s3 = inlined_call_operand.vmem [shape: f32[1,5], index: 3, kind: input, shape index: {}]
  %s4 = inlined_call_operand.<no memory space> [shape: f32[1,1], index: 4, kind: input, shape index: {}]
  %s5 = inlined_call_operand.vmem [shape: f32[1,128], index: 5, kind: output, shape index: {}]
  %s6 = sld [smem:[#allocation0]]
  $region30: #{simple_model_forward.1} parent=0
    _
  %s8 = ssub.s32 1, %s6
  %s9 = scalar_select 0, %s8, %s6
  %v10 = vstv %s4
  %11 = vst [vmem:[#allocation2] sm:$0x1] %v10
  // Predicated region
  $region2: #{simple_model_forward.1} parent=0 // pred_check
    _
  $region3: #{simple_model_forward.1} parent=0 // pred_check_branch
    %13 = sbr.rel (0) target = $region5
  $region4: #{simple_model_forward.1} parent=0 // pred_region
    _
  $region5: #{simple_model_forward.1} parent=0 // pred_fallthru
    _
  // Predicated region
  $region6: #{simple_model_forward.1} parent=0 // pred_check
    _
  $region7: #{simple_model_forward.1} parent=0 // pred_check_branch
    %15 = sbr.rel (0) target = $region9
  $region8: #{simple_model_forward.1} parent=0 // pred_region
    _
  $region9: #{simple_model_forward.1} parent=0 // pred_fallthru
    _
  // Predicated region
  $region10: #{simple_model_forward.1} parent=0 // pred_check
    _
  $region11: #{simple_model_forward.1} parent=0 // pred_check_branch
    %17 = sbr.rel (0) target = $region13
  $region12: #{simple_model_forward.1} parent=0 // pred_region
    _
  $region13: #{simple_model_forward.1} parent=0 // pred_fallthru
    _
  // Predicated region
  $region14: #{simple_model_forward.1} parent=0 // pred_check
    _
  $region15: #{simple_model_forward.1} parent=0 // pred_check_branch
    %19 = sbr.rel (0) target = $region17
  $region16: #{simple_model_forward.1} parent=0 // pred_region
    _
  $region17: #{simple_model_forward.1} parent=0 // pred_fallthru
    _
  // Predicated region
  $region18: #{simple_model_forward.1} parent=0 // pred_check
    _
  $region19: #{simple_model_forward.1} parent=0 // pred_check_branch
    %21 = sbr.rel (0) target = $region21
  $region20: #{simple_model_forward.1} parent=0 // pred_region
    _
  $region21: #{simple_model_forward.1} parent=0 // pred_fallthru
    _
  %v22 = vld [vmem:[%s0] sm:$0xff]
  %v23 = vld [vmem:[%s0 + $0x8] sm:$0x3]
  %v24 = vld [vmem:[%s1] sm:$0x1f]
  %v25 = vld [vmem:[%s3] sm:$0x1]
  %v26 = vld [vmem:[%s2] sm:$0x1f]
  %28 = vset.pattern.permute.xlu0 0
  %29 = vperm.xlu0 %28, %v26
  %v30 = vpop.permute.xlu0 %29
  %33 = vset.pattern.permute.xlu0 0
  %34 = vperm.xlu0 %33, %v24
  %v35 = vpop.permute.xlu0 %34
  %v37 = vlaneseq
  %v38 = vshrl.u32 %v37, 7
  %v39 = vsub.s32 0, %v38
  %v40 = vrot.slane %v22, %v39
  %v41 = vmul.f32 %v35, %v40
  %v42 = vadd.f32 %v30, %v41
  %43 = vset.pattern.permute.xlu0 1
  %44 = vperm.xlu0 %43, %v24
  %v45 = vpop.permute.xlu0 %44
  %v47 = vlaneseq
  %v48 = vshrl.u32 %v47, 7
  %v49 = vsub.s32 1, %v48
  %v50 = vrot.slane %v22, %v49
  %v51 = vmul.f32 %v45, %v50
  %v52 = vadd.f32 %v42, %v51
  %53 = vset.pattern.permute.xlu0 2
  %54 = vperm.xlu0 %53, %v24
  %v55 = vpop.permute.xlu0 %54
  %v57 = vlaneseq
  %v58 = vshrl.u32 %v57, 7
  %v59 = vsub.s32 2, %v58
  %v60 = vrot.slane %v22, %v59
  %v61 = vmul.f32 %v55, %v60
  %v62 = vadd.f32 %v52, %v61
  %63 = vset.pattern.permute.xlu0 3
  %64 = vperm.xlu0 %63, %v24
  %v65 = vpop.permute.xlu0 %64
  %v67 = vlaneseq
  %v68 = vshrl.u32 %v67, 7
  %v69 = vsub.s32 3, %v68
  %v70 = vrot.slane %v22, %v69
  %v71 = vmul.f32 %v65, %v70
  %v72 = vadd.f32 %v62, %v71
  %73 = vset.pattern.permute.xlu0 4
  %74 = vperm.xlu0 %73, %v24
  %v75 = vpop.permute.xlu0 %74
  %v77 = vlaneseq
  %v78 = vshrl.u32 %v77, 7
  %v79 = vsub.s32 4, %v78
  %v80 = vrot.slane %v22, %v79
  %v81 = vmul.f32 %v75, %v80
  %v82 = vadd.f32 %v72, %v81
  %83 = vset.pattern.permute.xlu0 5
  %84 = vperm.xlu0 %83, %v24
  %v85 = vpop.permute.xlu0 %84
  %v87 = vlaneseq
  %v88 = vshrl.u32 %v87, 7
  %v89 = vsub.s32 5, %v88
  %v90 = vrot.slane %v22, %v89
  %v91 = vmul.f32 %v85, %v90
  %v92 = vadd.f32 %v82, %v91
  %93 = vset.pattern.permute.xlu0 6
  %94 = vperm.xlu0 %93, %v24
  %v95 = vpop.permute.xlu0 %94
  %v97 = vlaneseq
  %v98 = vshrl.u32 %v97, 7
  %v99 = vsub.s32 6, %v98
  %v100 = vrot.slane %v22, %v99
  %v101 = vmul.f32 %v95, %v100
  %v102 = vadd.f32 %v92, %v101
  %103 = vset.pattern.permute.xlu0 7
  %104 = vperm.xlu0 %103, %v24
  %v105 = vpop.permute.xlu0 %104
  %v107 = vlaneseq
  %v108 = vshrl.u32 %v107, 7
  %v109 = vsub.s32 7, %v108
  %v110 = vrot.slane %v22, %v109
  %v111 = vmul.f32 %v105, %v110
  %v112 = vadd.f32 %v102, %v111
  %113 = vset.pattern.permute.xlu0 8
  %114 = vperm.xlu0 %113, %v24
  %v115 = vpop.permute.xlu0 %114
  %v117 = vlaneseq
  %v118 = vshrl.u32 %v117, 7
  %v119 = vsub.s32 0, %v118
  %v120 = vrot.slane %v23, %v119
  %v121 = vmul.f32 %v115, %v120
  %v122 = vadd.f32 %v112, %v121
  %123 = vset.pattern.permute.xlu0 9
  %124 = vperm.xlu0 %123, %v24
  %v125 = vpop.permute.xlu0 %124
  %v127 = vlaneseq
  %v128 = vshrl.u32 %v127, 7
  %v129 = vsub.s32 1, %v128
  %v130 = vrot.slane %v23, %v129
  %v131 = vmul.f32 %v125, %v130
  %v132 = vadd.f32 %v122, %v131
  %v133 = vmax.f32 %v132, 0.0
  %v134 = vld [vmem:[#allocation2] sm:$0x1]
  %136 = vset.pattern.permute.xlu0 0
  %137 = vperm.xlu0 %136, %v134
  %v138 = vpop.permute.xlu0 %137
  %v140 = vlaneseq
  %v141 = vshrl.u32 %v140, 7
  %v142 = vsub.s32 0, %v141
  %v143 = vrot.slane %v138, %v142
  %145 = vset.pattern.permute.xlu0 0
  %146 = vperm.xlu0 %145, %v25
  %v147 = vpop.permute.xlu0 %146
  %v149 = vlaneseq
  %v150 = vshrl.u32 %v149, 7
  %v151 = vsub.s32 0, %v150
  %v152 = vrot.slane %v147, %v151
  %v153 = vmul.f32 %v152, %v133
  %v154 = vadd.f32 %v143, %v153
  %155 = vset.pattern.permute.xlu0 1
  %156 = vperm.xlu0 %155, %v25
  %v157 = vpop.permute.xlu0 %156
  %v159 = vlaneseq
  %v160 = vshrl.u32 %v159, 7
  %v161 = vsub.s32 0, %v160
  %v162 = vrot.slane %v157, %v161
  %v163 = vmul.f32 %v162, %v133
  %v165 = vrot.slane %v163, 1
  %v167 = vadd.f32 %v154, %v165
  %168 = vset.pattern.permute.xlu0 2
  %169 = vperm.xlu0 %168, %v25
  %v170 = vpop.permute.xlu0 %169
  %v172 = vlaneseq
  %v173 = vshrl.u32 %v172, 7
  %v174 = vsub.s32 0, %v173
  %v175 = vrot.slane %v170, %v174
  %v176 = vmul.f32 %v175, %v133
  %v178 = vrot.slane %v176, 2
  %v180 = vadd.f32 %v167, %v178
  %181 = vset.pattern.permute.xlu0 3
  %182 = vperm.xlu0 %181, %v25
  %v183 = vpop.permute.xlu0 %182
  %v185 = vlaneseq
  %v186 = vshrl.u32 %v185, 7
  %v187 = vsub.s32 0, %v186
  %v188 = vrot.slane %v183, %v187
  %v189 = vmul.f32 %v188, %v133
  %v191 = vrot.slane %v189, 3
  %v193 = vadd.f32 %v180, %v191
  %194 = vset.pattern.permute.xlu0 4
  %195 = vperm.xlu0 %194, %v25
  %v196 = vpop.permute.xlu0 %195
  %v198 = vlaneseq
  %v199 = vshrl.u32 %v198, 7
  %v200 = vsub.s32 0, %v199
  %v201 = vrot.slane %v196, %v200
  %v202 = vmul.f32 %v201, %v133
  %v204 = vrot.slane %v202, 4
  %v206 = vadd.f32 %v193, %v204
  %v207 = vxor.u32 %v206, 2147483648
  %v208 = vmul.f32 %v207, 1.442695
  %v209 = vpow.pop %v208
  %v210 = vadd.f32 %v209, 1.0
  %v211 = vrcp.pop %v210
  %v212 = vmul.f32 1.0, %v211
  %213 = vst [vmem:[%s5] sm:$0x1] %v212
  // Predicated region
  $region22: #{simple_model_forward.1} parent=0 // pred_check
    _
  $region23: #{simple_model_forward.1} parent=0 // pred_check_branch
    %215 = sbr.rel (0) target = $region25
  $region24: #{simple_model_forward.1} parent=0 // pred_region
    _
  $region25: #{simple_model_forward.1} parent=0 // pred_fallthru
    _
  // Predicated region
  $region26: #{simple_model_forward.1} parent=0 // pred_check
    _
  $region27: #{simple_model_forward.1} parent=0 // pred_check_branch
    %217 = sbr.rel (0) target = $region29
  $region28: #{simple_model_forward.1} parent=0 // pred_region
    _
  $region29: #{simple_model_forward.1} parent=0 // pred_fallthru
    _

</llo_original>
